<compile_context>
chip_gen: v7x
topology: tpu7x:2x2x1
jax: 0.10.0
libtpu: 0.0.40
codegen_flags: <defaults>
</compile_context>

<pallas_src>
import functools

import jax
import jax.numpy as jnp
from jax import lax
from jax.experimental import pallas as pl
from jax.experimental.pallas import tpu as pltpu


def _layernorm(x, g, b, eps=1e-5):
    mu = jnp.mean(x, axis=-1, keepdims=True)
    var = jnp.mean(jnp.square(x - mu), axis=-1, keepdims=True)
    return (x - mu) * lax.rsqrt(var + eps) * g + b


def mha_kernel(x_ref, wqkv_ref, wo_ref, ln_g_ref, ln_b_ref, out_ref,
               xc_ref, av_ref, *, n_head, d_head, compute_dtype):
    """One (batch, head) grid step.

    x_ref    : (qlen, d_model)             activations for this batch element
    wqkv_ref : (n_head, d_model, 3*d_head) fused q|k|v weights (VMEM-resident,
                                           scale folded into the q columns)
    wo_ref   : (H, d_model)                output projection (VMEM-resident)
    ln_*     : (1, d_model)
    out_ref  : (qlen, d_model)             written on the last head only
    xc_ref   : (qlen, d_model)             cached compute-dtype activations
    av_ref   : (qlen, H)                   per-head attention vectors
    """
    n = pl.program_id(1)

    # Cache compute-dtype activations once per batch element; heads reuse it.
    @pl.when(n == 0)
    def _():
        xc_ref[...] = x_ref[...].astype(compute_dtype)

    xc = xc_ref[...]

    # Fused q/k/v projection for this head: (qlen, d_model) @ (d_model, 3*d_head)
    w = wqkv_ref[n]                              # (d_model, 3*d_head)
    qkv = jnp.dot(xc, w, preferred_element_type=jnp.float32)
    q = qkv[:, :d_head]
    k = qkv[:, d_head:2 * d_head]
    v = qkv[:, 2 * d_head:]

    # scores = (q * scale) @ k^T   (scale already folded into wq on the host)
    s = lax.dot_general(q.astype(compute_dtype), k.astype(compute_dtype),
                        dimension_numbers=(((1,), (1,)), ((), ())),
                        preferred_element_type=jnp.float32)  # (qlen, qlen)

    # softmax over keys (torch softmax(dim=1) of (i,j,b,n)) -- f32 math,
    # minimal live intermediates.
    s = s - jnp.max(s, axis=-1, keepdims=True)
    p = jnp.exp(s)
    p = p * pl.reciprocal(jnp.sum(p, axis=-1, keepdims=True), approx=True)

    av = jnp.dot(p.astype(compute_dtype), v.astype(compute_dtype),
                 preferred_element_type=jnp.float32)          # (qlen, d_head)
    av = av.astype(compute_dtype)

    # Deferred o-projection: stash this head's attention vector in its static
    # column slice of the (qlen, H) scratch (unrolled pl.when -> static offsets).
    for h in range(n_head):
        @pl.when(n == h)
        def _(av=av, h=h):
            av_ref[:, h * d_head:(h + 1) * d_head] = av

    @pl.when(n == n_head - 1)
    def _():
        # Single full-width o-projection (K = H), residual + post-LayerNorm,
        # lane-dense full-block output store.
        attn_out = jnp.dot(av_ref[...], wo_ref[...],
                           preferred_element_type=jnp.float32)  # (qlen, d_model)
        out_ref[...] = _layernorm(x_ref[...] + attn_out,
                                  ln_g_ref[...], ln_b_ref[...])


def _default_vmem_limit():
    # Generation-aware VMEM budget (~62% of per-core VMEM, clamped).
    try:
        cap = int(getattr(pltpu.get_tpu_info(), "vmem_capacity_bytes", 0))
    except Exception:
        cap = 0
    if cap <= 0:
        cap = 64 * 1024 * 1024          # conservative: v7x per-TC size
    return max(16 * 1024 * 1024, min((cap * 5) // 8, 96 * 1024 * 1024))


def multi_head_attn(h, params, *, n_head, d_head, compute_dtype=jnp.float32):
    """h: (qlen, bsz, d_model); params hold torch nn.Linear layouts:
       q_w (H, d_model), kv_w (2H, d_model), o_w (d_model, H), ln_g/ln_b (d_model,)."""
    qlen, bsz, d_model = h.shape
    H = n_head * d_head
    scale = 1.0 / (d_head ** 0.5)

    q_w = params["q_w"]
    kv_w = params["kv_w"]
    o_w = params["o_w"]
    k_w, v_w = kv_w[:H], kv_w[H:]

    # Head-major fused q|k|v weights: (n_head, d_model, 3*d_head).
    # Whole-head blocks -> full last-two-dims per BlockSpec, no (8,128) issues.
    def to_heads_in(w):  # (H, d_model) -> (n_head, d_model, d_head)
        return jnp.transpose(w.reshape(n_head, d_head, d_model), (0, 2, 1))

    wq3 = to_heads_in(q_w) * scale               # fold 1/sqrt(d_head) into q
    wk3 = to_heads_in(k_w)
    wv3 = to_heads_in(v_w)
    wqkv3 = jnp.concatenate([wq3, wk3, wv3], axis=-1).astype(compute_dtype)
    wo2 = jnp.transpose(o_w, (1, 0)).astype(compute_dtype)   # (H, d_model)

    ln_g = params["ln_g"].reshape(1, d_model)
    ln_b = params["ln_b"].reshape(1, d_model)

    # Batch-major activations so each block's aligned last-two dims are
    # (qlen, d_model). (Cheap one-shot XLA transpose.)
    x = jnp.transpose(h, (1, 0, 2))  # (bsz, qlen, d_model)

    kernel = functools.partial(mha_kernel, n_head=n_head, d_head=d_head,
                               compute_dtype=compute_dtype)

    out = pl.pallas_call(
        kernel,
        out_shape=jax.ShapeDtypeStruct((bsz, qlen, d_model), jnp.float32),
        grid_spec=pltpu.PrefetchScalarGridSpec(
            num_scalar_prefetch=0,
            grid=(bsz, n_head),                     # head = innermost reduction
            in_specs=[
                # activations: one batch element per b, resident across heads
                pl.BlockSpec((None, qlen, d_model), lambda b, n: (b, 0, 0)),
                # weights / LN params: constant block index -> DMA'd once
                pl.BlockSpec((n_head, d_model, 3 * d_head),
                             lambda b, n: (0, 0, 0)),
                pl.BlockSpec((H, d_model), lambda b, n: (0, 0)),
                pl.BlockSpec((1, d_model), lambda b, n: (0, 0)),
                pl.BlockSpec((1, d_model), lambda b, n: (0, 0)),
            ],
            out_specs=pl.BlockSpec((None, qlen, d_model), lambda b, n: (b, 0, 0)),
            scratch_shapes=[
                pltpu.VMEM((qlen, d_model), compute_dtype),  # cached activations
                pltpu.VMEM((qlen, H), compute_dtype),        # per-head attn vecs
            ],
        ),
        compiler_params=pltpu.CompilerParams(
            dimension_semantics=("parallel", "arbitrary"),
            vmem_limit_bytes=_default_vmem_limit(),
        ),
    )(x, wqkv3, wo2, ln_g, ln_b)

    return jnp.transpose(out, (1, 0, 2))  # back to (qlen, bsz, d_model)


# ---------------------------- pure-JAX reference ----------------------------
def reference(h, params, *, n_head, d_head):
    qlen, bsz, d_model = h.shape
    H = n_head * d_head
    head_q = h @ params["q_w"].T                         # (qlen, bsz, H)
    head_kv = h @ params["kv_w"].T                       # (qlen, bsz, 2H)
    head_k, head_v = jnp.split(head_kv, 2, axis=-1)
    head_q = head_q.reshape(qlen, bsz, n_head, d_head)
    head_k = head_k.reshape(qlen, bsz, n_head, d_head)
    head_v = head_v.reshape(qlen, bsz, n_head, d_head)
    attn_score = jnp.einsum("ibnd,jbnd->ijbn", head_q, head_k) * (1.0 / d_head ** 0.5)
    attn_prob = jax.nn.softmax(attn_score, axis=1)
    attn_vec = jnp.einsum("ijbn,jbnd->ibnd", attn_prob, head_v).reshape(qlen, bsz, H)
    attn_out = attn_vec @ params["o_w"].T
    return _layernorm(h + attn_out, params["ln_g"], params["ln_b"])


if __name__ == "__main__":
    n_head, d_model, d_head = 2, 32, 8
    qlen, bsz = 8, 2
    H = n_head * d_head

    key = jax.random.PRNGKey(0)
    ks = jax.random.split(key, 8)
    init = lambda k, shape, sc=0.1: jax.random.normal(k, shape, jnp.float32) * sc

    params = dict(
        q_w=init(ks[0], (H, d_model)),          # torch q_net.weight  (out, in)
        kv_w=init(ks[1], (2 * H, d_model)),     # torch kv_net.weight (out, in)
        o_w=init(ks[2], (d_model, H)),          # torch o_net.weight  (out, in)
        ln_g=1.0 + init(ks[3], (d_model,)),
        ln_b=init(ks[4], (d_model,)),
    )
    h = jax.random.normal(ks[5], (qlen, bsz, d_model), jnp.float32)

    out = multi_head_attn(h, params, n_head=n_head, d_head=d_head)
    out = jax.block_until_ready(out)

    ref = reference(h, params, n_head=n_head, d_head=d_head)
    assert out.shape == (qlen, bsz, d_model)
    err = float(jnp.max(jnp.abs(out - ref)))
    assert jnp.allclose(out, ref, atol=2e-3, rtol=2e-3), f"max abs err {err}"
    print("KERNEL_OK")
</pallas_src>

<mosaic_0001>
module attributes {stable_mosaic.version = 11 : i64} {
  func.func @mha_kernel(%arg0: i32, %arg1: i32, %arg2: memref<1x8x32xf32, #tpu.memory_space<vmem>>, %arg3: memref<2x32x24xf32, #tpu.memory_space<vmem>>, %arg4: memref<16x32xf32, #tpu.memory_space<vmem>>, %arg5: memref<1x32xf32, #tpu.memory_space<vmem>>, %arg6: memref<1x32xf32, #tpu.memory_space<vmem>>, %arg7: memref<1x8x32xf32, #tpu.memory_space<vmem>>, %arg8: memref<8x32xf32, #tpu.memory_space<vmem>>, %arg9: memref<8x16xf32, #tpu.memory_space<vmem>>) attributes {dimension_semantics = [#tpu.dimension_semantics<parallel>, #tpu.dimension_semantics<arbitrary>], iteration_bounds = array<i64: 2, 2>, scalar_prefetch = 0 : i64, scratch_operands = 2 : i64, tpu.core_type = #tpu.core_type<tc>, window_params = [{transform_indices = @transform_0, window_bounds = array<i64: 1, 8, 32>}, {pipeline_mode = #tpu.pipeline_mode<synchronous>, transform_indices = @transform_1, window_bounds = array<i64: 2, 32, 24>}, {pipeline_mode = #tpu.pipeline_mode<synchronous>, transform_indices = @transform_2, window_bounds = array<i64: 16, 32>}, {pipeline_mode = #tpu.pipeline_mode<synchronous>, transform_indices = @transform_3, window_bounds = array<i64: 1, 32>}, {pipeline_mode = #tpu.pipeline_mode<synchronous>, transform_indices = @transform_4, window_bounds = array<i64: 1, 32>}, {transform_indices = @transform_5, window_bounds = array<i64: 1, 8, 32>}]} {
    %c0_i32 = arith.constant 0 : i32
    %0 = arith.cmpi eq, %arg1, %c0_i32 : i32
    %1 = arith.extui %0 : i1 to i32
    %c0_i32_0 = arith.constant 0 : i32
    %2 = arith.cmpi ne, %1, %c0_i32_0 : i32
    scf.if %2 {
      %c0_13 = arith.constant 0 : index
      %c0_14 = arith.constant 0 : index
      %c0_15 = arith.constant 0 : index
      %32 = vector.load %arg2[%c0_13, %c0_14, %c0_15] : memref<1x8x32xf32, #tpu.memory_space<vmem>>, vector<1x8x32xf32>
      %33 = vector.shape_cast %32 : vector<1x8x32xf32> to vector<8x32xf32>
      %c0_16 = arith.constant 0 : index
      %c0_17 = arith.constant 0 : index
      %34 = vector.load %arg8[%c0_16, %c0_17] : memref<8x32xf32, #tpu.memory_space<vmem>>, vector<8x32xf32>
      tpu.vector_store %arg8[%c0_16, %c0_17], %33 {strides = array<i32>} : memref<8x32xf32, #tpu.memory_space<vmem>>, vector<8x32xf32>,
    } else {
    }
    %c0 = arith.constant 0 : index
    %c0_1 = arith.constant 0 : index
    %3 = vector.load %arg8[%c0, %c0_1] : memref<8x32xf32, #tpu.memory_space<vmem>>, vector<8x32xf32>
    %4 = arith.index_cast %arg1 : i32 to index
    %c0_2 = arith.constant 0 : index
    %c0_3 = arith.constant 0 : index
    %5 = vector.load %arg3[%4, %c0_2, %c0_3] : memref<2x32x24xf32, #tpu.memory_space<vmem>>, vector<1x32x24xf32>
    %6 = vector.shape_cast %5 : vector<1x32x24xf32> to vector<32x24xf32>
    %cst = arith.constant dense<0.000000e+00> : vector<8x24xf32>
    %7 = tpu.matmul %3, %6, %cst {dimension_numbers = #tpu.dot_dimension_numbers<[1], [0], [0], [1], [0, 0, 1, 1], [], []>} : vector<8x32xf32>, vector<32x24xf32>, vector<8x24xf32> -> vector<8x24xf32>
    %8 = vector.extract_strided_slice %7 {offsets = [0, 0], sizes = [8, 8], strides = [1, 1]} : vector<8x24xf32> to vector<8x8xf32>
    %9 = vector.extract_strided_slice %7 {offsets = [0, 8], sizes = [8, 8], strides = [1, 1]} : vector<8x24xf32> to vector<8x8xf32>
    %10 = vector.extract_strided_slice %7 {offsets = [0, 16], sizes = [8, 8], strides = [1, 1]} : vector<8x24xf32> to vector<8x8xf32>
    %cst_4 = arith.constant dense<0.000000e+00> : vector<8x8xf32>
    %11 = tpu.matmul %8, %9, %cst_4 {dimension_numbers = #tpu.dot_dimension_numbers<[1], [1], [0], [0], [0, 0, 1, 0], [], []>} : vector<8x8xf32>, vector<8x8xf32>, vector<8x8xf32> -> vector<8x8xf32>
    %cst_5 = arith.constant dense<0xFF800000> : vector<8xf32>
    %12 = vector.multi_reduction <maximumf>, %11, %cst_5 [1] : vector<8x8xf32> to vector<8xf32>
    %13 = vector.shape_cast %12 : vector<8xf32> to vector<8x1xf32>
    %14 = vector.broadcast %13 : vector<8x1xf32> to vector<8x8xf32>
    %15 = arith.subf %11, %14 : vector<8x8xf32>
    %16 = math.exp %15 : vector<8x8xf32>
    %cst_6 = arith.constant dense<0.000000e+00> : vector<8xf32>
    %17 = vector.multi_reduction <add>, %16, %cst_6 [1] : vector<8x8xf32> to vector<8xf32>
    %18 = vector.shape_cast %17 : vector<8xf32> to vector<8x1xf32>
    %19 = tpu.reciprocal %18 {approx = true} : vector<8x1xf32> -> vector<8x1xf32>
    %20 = vector.broadcast %19 : vector<8x1xf32> to vector<8x8xf32>
    %21 = arith.mulf %16, %20 : vector<8x8xf32>
    %cst_7 = arith.constant dense<0.000000e+00> : vector<8x8xf32>
    %22 = tpu.matmul %21, %10, %cst_7 {dimension_numbers = #tpu.dot_dimension_numbers<[1], [0], [0], [1], [0, 0, 1, 1], [], []>} : vector<8x8xf32>, vector<8x8xf32>, vector<8x8xf32> -> vector<8x8xf32>
    %c0_i32_8 = arith.constant 0 : i32
    %23 = arith.cmpi eq, %arg1, %c0_i32_8 : i32
    %24 = arith.extui %23 : i1 to i32
    %c0_i32_9 = arith.constant 0 : i32
    %25 = arith.cmpi ne, %24, %c0_i32_9 : i32
    scf.if %25 {
      %c0_13 = arith.constant 0 : index
      %c0_14 = arith.constant 0 : index
      %32 = vector.load %arg9[%c0_13, %c0_14] : memref<8x16xf32, #tpu.memory_space<vmem>>, vector<8x8xf32>
      tpu.vector_store %arg9[%c0_13, %c0_14], %22 {strides = array<i32>} : memref<8x16xf32, #tpu.memory_space<vmem>>, vector<8x8xf32>,
    } else {
    }
    %c1_i32 = arith.constant 1 : i32
    %26 = arith.cmpi eq, %arg1, %c1_i32 : i32
    %27 = arith.extui %26 : i1 to i32
    %c0_i32_10 = arith.constant 0 : i32
    %28 = arith.cmpi ne, %27, %c0_i32_10 : i32
    scf.if %28 {
      %c0_13 = arith.constant 0 : index
      %c8 = arith.constant 8 : index
      %32 = vector.load %arg9[%c0_13, %c8] : memref<8x16xf32, #tpu.memory_space<vmem>>, vector<8x8xf32>
      tpu.vector_store %arg9[%c0_13, %c8], %22 {strides = array<i32>} : memref<8x16xf32, #tpu.memory_space<vmem>>, vector<8x8xf32>,
    } else {
    }
    %c1_i32_11 = arith.constant 1 : i32
    %29 = arith.cmpi eq, %arg1, %c1_i32_11 : i32
    %30 = arith.extui %29 : i1 to i32
    %c0_i32_12 = arith.constant 0 : i32
    %31 = arith.cmpi ne, %30, %c0_i32_12 : i32
    scf.if %31 {
      %c0_13 = arith.constant 0 : index
      %c0_14 = arith.constant 0 : index
      %32 = vector.load %arg9[%c0_13, %c0_14] : memref<8x16xf32, #tpu.memory_space<vmem>>, vector<8x16xf32>
      %c0_15 = arith.constant 0 : index
      %c0_16 = arith.constant 0 : index
      %33 = vector.load %arg4[%c0_15, %c0_16] : memref<16x32xf32, #tpu.memory_space<vmem>>, vector<16x32xf32>
      %cst_17 = arith.constant dense<0.000000e+00> : vector<8x32xf32>
      %34 = tpu.matmul %32, %33, %cst_17 {dimension_numbers = #tpu.dot_dimension_numbers<[1], [0], [0], [1], [0, 0, 1, 1], [], []>} : vector<8x16xf32>, vector<16x32xf32>, vector<8x32xf32> -> vector<8x32xf32>
      %c0_18 = arith.constant 0 : index
      %c0_19 = arith.constant 0 : index
      %c0_20 = arith.constant 0 : index
      %35 = vector.load %arg2[%c0_18, %c0_19, %c0_20] : memref<1x8x32xf32, #tpu.memory_space<vmem>>, vector<1x8x32xf32>
      %36 = vector.shape_cast %35 : vector<1x8x32xf32> to vector<8x32xf32>
      %37 = arith.addf %36, %34 : vector<8x32xf32>
      %c0_21 = arith.constant 0 : index
      %c0_22 = arith.constant 0 : index
      %38 = vector.load %arg5[%c0_21, %c0_22] : memref<1x32xf32, #tpu.memory_space<vmem>>, vector<1x32xf32>
      %c0_23 = arith.constant 0 : index
      %c0_24 = arith.constant 0 : index
      %39 = vector.load %arg6[%c0_23, %c0_24] : memref<1x32xf32, #tpu.memory_space<vmem>>, vector<1x32xf32>
      %cst_25 = arith.constant dense<0.000000e+00> : vector<8xf32>
      %40 = vector.multi_reduction <add>, %37, %cst_25 [1] : vector<8x32xf32> to vector<8xf32>
      %41 = vector.shape_cast %40 : vector<8xf32> to vector<8x1xf32>
      %cst_26 = arith.constant 3.200000e+01 : f32
      %42 = vector.broadcast %cst_26 : f32 to vector<8x1xf32>
      %43 = arith.divf %41, %42 : vector<8x1xf32>
      %44 = vector.broadcast %43 : vector<8x1xf32> to vector<8x32xf32>
      %45 = arith.subf %37, %44 : vector<8x32xf32>
      %46 = arith.mulf %45, %45 : vector<8x32xf32>
      %cst_27 = arith.constant dense<0.000000e+00> : vector<8xf32>
      %47 = vector.multi_reduction <add>, %46, %cst_27 [1] : vector<8x32xf32> to vector<8xf32>
      %48 = vector.shape_cast %47 : vector<8xf32> to vector<8x1xf32>
      %cst_28 = arith.constant 3.200000e+01 : f32
      %49 = vector.broadcast %cst_28 : f32 to vector<8x1xf32>
      %50 = arith.divf %48, %49 : vector<8x1xf32>
      %51 = vector.broadcast %43 : vector<8x1xf32> to vector<8x32xf32>
      %52 = arith.subf %37, %51 : vector<8x32xf32>
      %cst_29 = arith.constant 9.99999974E-6 : f32
      %53 = vector.broadcast %cst_29 : f32 to vector<8x1xf32>
      %54 = arith.addf %50, %53 : vector<8x1xf32>
      %55 = math.rsqrt %54 : vector<8x1xf32>
      %56 = vector.broadcast %55 : vector<8x1xf32> to vector<8x32xf32>
      %57 = arith.mulf %52, %56 : vector<8x32xf32>
      %58 = vector.broadcast %38 : vector<1x32xf32> to vector<8x32xf32>
      %59 = arith.mulf %57, %58 : vector<8x32xf32>
      %60 = vector.broadcast %39 : vector<1x32xf32> to vector<8x32xf32>
      %61 = arith.addf %59, %60 : vector<8x32xf32>
      %c0_30 = arith.constant 0 : index
      %c0_31 = arith.constant 0 : index
      %c0_32 = arith.constant 0 : index
      %62 = vector.load %arg7[%c0_30, %c0_31, %c0_32] : memref<1x8x32xf32, #tpu.memory_space<vmem>>, vector<1x8x32xf32>
      %63 = vector.shape_cast %62 : vector<1x8x32xf32> to vector<8x32xf32>
      %64 = vector.shape_cast %61 : vector<8x32xf32> to vector<1x8x32xf32>
      tpu.vector_store %arg7[%c0_30, %c0_31, %c0_32], %64 {strides = array<i32>} : memref<1x8x32xf32, #tpu.memory_space<vmem>>, vector<1x8x32xf32>,
    } else {
    }
    return
  }
  func.func @transform_0(%arg0: i32, %arg1: i32) -> (i32, i32, i32) {
    %c0_i32 = arith.constant 0 : i32
    %c0_i32_0 = arith.constant 0 : i32
    %c0_i32_1 = arith.constant 0 : i32
    return %arg0, %c0_i32, %c0_i32_0 : i32, i32, i32
  }
  func.func @transform_1(%arg0: i32, %arg1: i32) -> (i32, i32, i32) {
    %c0_i32 = arith.constant 0 : i32
    %c0_i32_0 = arith.constant 0 : i32
    %c0_i32_1 = arith.constant 0 : i32
    %c0_i32_2 = arith.constant 0 : i32
    return %c0_i32, %c0_i32_0, %c0_i32_1 : i32, i32, i32
  }
  func.func @transform_2(%arg0: i32, %arg1: i32) -> (i32, i32) {
    %c0_i32 = arith.constant 0 : i32
    %c0_i32_0 = arith.constant 0 : i32
    %c0_i32_1 = arith.constant 0 : i32
    return %c0_i32, %c0_i32_0 : i32, i32
  }
  func.func @transform_3(%arg0: i32, %arg1: i32) -> (i32, i32) {
    %c0_i32 = arith.constant 0 : i32
    %c0_i32_0 = arith.constant 0 : i32
    %c0_i32_1 = arith.constant 0 : i32
    return %c0_i32, %c0_i32_0 : i32, i32
  }
  func.func @transform_4(%arg0: i32, %arg1: i32) -> (i32, i32) {
    %c0_i32 = arith.constant 0 : i32
    %c0_i32_0 = arith.constant 0 : i32
    %c0_i32_1 = arith.constant 0 : i32
    return %c0_i32, %c0_i32_0 : i32, i32
  }
  func.func @transform_5(%arg0: i32, %arg1: i32) -> (i32, i32, i32) {
    %c0_i32 = arith.constant 0 : i32
    %c0_i32_0 = arith.constant 0 : i32
    %c0_i32_1 = arith.constant 0 : i32
    return %arg0, %c0_i32, %c0_i32_0 : i32, i32, i32
  }
}

</mosaic_0001>

<llo_original>
// kernel: tpu_custom_call.1
$region0: #{tpu_custom_call.1}
  #allocation0 [shape = 'u32[]', space=smem, size = 0x4, offset = 0x4, fixed_abs, tag = 'smem constant byte address 0x4 - core index']
  #allocation1 [shape = 'u32[144,128]{1,0:T(1,128)}', space=vmem, size = 0x12000, scoped, tag = 'internal scratch']
  #allocation2 [shape = 'f32[8,32]{1,0:T(8,128)}', space=vmem, size = 0x1000, scoped, tag = 'scratch operand']
  #allocation3 [shape = 'f32[8,16]{1,0:T(8,128)}', space=vmem, size = 0x1000, scoped, tag = 'scratch operand']
  %s0 = inlined_call_operand.vmem [shape: f32[2,8,32], index: 0, kind: input, shape index: {}]
  %s1 = inlined_call_operand.vmem [shape: f32[2,32,24], index: 1, kind: input, shape index: {}]
  %s2 = inlined_call_operand.vmem [shape: f32[16,32], index: 2, kind: input, shape index: {}]
  %s3 = inlined_call_operand.vmem [shape: f32[1,32], index: 3, kind: input, shape index: {}]
  %s4 = inlined_call_operand.vmem [shape: f32[1,32], index: 4, kind: input, shape index: {}]
  %s5 = inlined_call_operand.hbm [shape: f32[2,8,32], index: 5, kind: output, shape index: {}]
  %s6 = sld [smem:[#allocation0]]
  $region65: #{tpu_custom_call.1} parent=0
    _
  %s8 = ssub.s32 1, %s6
  %s9 = scalar_select 0, %s8, %s6
  $region1: #{tpu_custom_call.1} parent=0
    #allocation4 [shape = 'u8[8192]{0}', space=vmem, size = 0x2000, scoped, tag = 'output window, operand 0']
    #allocation5 [shape = 's32[2]{0}', space=sflag, size = 0x8, scoped, tag = 'scoped memory for tpu_custom_call.1']
    %10 = vsyncpa [#allocation5], 0
    %s11 = scalar_lea.sflag [#allocation5], 1
    %12 = vsyncpa %s11, 0
    loop: start=0, step=1, limit=6
    $region2: #{tpu_custom_call.1} parent=1 // loop_pre_header
      _
    $region3: #{tpu_custom_call.1} parent=1 // loop_header
      %s14 = sphi 0, %s18
      %p15 = scmp.ge.s32.totalorder %s14, 6
      %s21 = sphi 0, %s33
      %s22 = sphi 0, %s29
      %s23 = sphi 0, %s21
      %s24 = sphi 0, %s22
      %s25 = sphi 0, %s23
      %s26 = sphi 0, %s24
      %s36 = sphi 0, %s38
      %s39 = sphi 0, %s36
      %s40 = sphi 0, %s39
      %s56 = sphi 0, %s40
      %s60 = sphi 0, %s60
      %s62 = sphi 0, %s60
      %s63 = sphi 0, %s62
      %s77 = sphi 0, %s63
      %s81 = sphi 0, %s81
      %s83 = sphi 0, %s81
      %s84 = sphi 0, %s83
      %s98 = sphi 0, %s84
      %s102 = sphi 0, %s102
      %s104 = sphi 0, %s102
      %s105 = sphi 0, %s104
      %s119 = sphi 0, %s105
      %s123 = sphi 0, %s123
      %s125 = sphi 0, %s123
      %s126 = sphi 0, %s125
      %s140 = sphi 0, %s126
      %s146 = sphi 0, %s148
      %s149 = sphi 0, %s146
      %s150 = sphi 0, %s149
      %s166 = sphi 0, %s150
    $region4: #{tpu_custom_call.1} parent=1 // loop_header_branch
      %17 = sbr.rel (%p15) target = $region8
    $region5: #{tpu_custom_call.1} parent=1 // loop_body
      %s19 = ssub.s32 %s14, 1
      %s20 = ssub.s32 %s14, 2
      %s27 = sadd.s32 1, %s22
      %p28 = scmp.ge.s32.totalorder %s27, 2
      %s29 = scalar_select %p28, 0, %s27
      %s30 = sadd.s32 1, %s21
      %s31 = scalar_select %p28, %s30, %s21
      %p32 = scmp.ge.s32.totalorder %s31, 2
      %s33 = scalar_select %p32, 0, %s31
      %s34 = ssub.s32 %s21, %s33
      %p35 = scmp.eq.s32.totalorder %s34, 0
      %s37 = sadd.s32 %s36, 1
      %s38 = scalar_select %p35, %s36, %s37
      %p41 = pneg %p35
      %p42 = scmp.eq.s32.totalorder %s14, 3
      %p43 = por %p41, %p42
      %p44 = scmp.ne.s32.totalorder %s36, %s39
      %p45 = scmp.eq.s32.totalorder %s14, 0
      %p46 = por %p44, %p45
      %p47 = scmp.ne.s32.totalorder %s36, %s39
      %p48 = scmp.eq.s32.totalorder %s19, 3
      %p49 = por %p47, %p48
      %p50 = scmp.ne.s32.totalorder %s39, %s40
      %p51 = scmp.eq.s32.totalorder %s19, 0
      %p52 = por %p50, %p51
      %p53 = scmp.ne.s32.totalorder %s39, %s40
      %p54 = scmp.eq.s32.totalorder %s20, 3
      %p55 = por %p53, %p54
      %p57 = scmp.ne.s32.totalorder %s40, %s56
      %p58 = scmp.eq.s32.totalorder %s20, 0
      %p59 = por %p57, %p58
      %s61 = sadd.s32 %s60, 1
      %p64 = scmp.eq.s32.totalorder %s14, 3
      %p65 = scmp.ne.s32.totalorder %s60, %s62
      %p66 = scmp.eq.s32.totalorder %s14, 0
      %p67 = por %p65, %p66
      %p68 = scmp.ne.s32.totalorder %s60, %s62
      %p69 = scmp.eq.s32.totalorder %s19, 3
      %p70 = por %p68, %p69
      %p71 = scmp.ne.s32.totalorder %s62, %s63
      %p72 = scmp.eq.s32.totalorder %s19, 0
      %p73 = por %p71, %p72
      %p74 = scmp.ne.s32.totalorder %s62, %s63
      %p75 = scmp.eq.s32.totalorder %s20, 3
      %p76 = por %p74, %p75
      %p78 = scmp.ne.s32.totalorder %s63, %s77
      %p79 = scmp.eq.s32.totalorder %s20, 0
      %p80 = por %p78, %p79
      %s82 = sadd.s32 %s81, 1
      %p85 = scmp.eq.s32.totalorder %s14, 3
      %p86 = scmp.ne.s32.totalorder %s81, %s83
      %p87 = scmp.eq.s32.totalorder %s14, 0
      %p88 = por %p86, %p87
      %p89 = scmp.ne.s32.totalorder %s81, %s83
      %p90 = scmp.eq.s32.totalorder %s19, 3
      %p91 = por %p89, %p90
      %p92 = scmp.ne.s32.totalorder %s83, %s84
      %p93 = scmp.eq.s32.totalorder %s19, 0
      %p94 = por %p92, %p93
      %p95 = scmp.ne.s32.totalorder %s83, %s84
      %p96 = scmp.eq.s32.totalorder %s20, 3
      %p97 = por %p95, %p96
      %p99 = scmp.ne.s32.totalorder %s84, %s98
      %p100 = scmp.eq.s32.totalorder %s20, 0
      %p101 = por %p99, %p100
      %s103 = sadd.s32 %s102, 1
      %p106 = scmp.eq.s32.totalorder %s14, 3
      %p107 = scmp.ne.s32.totalorder %s102, %s104
      %p108 = scmp.eq.s32.totalorder %s14, 0
      %p109 = por %p107, %p108
      %p110 = scmp.ne.s32.totalorder %s102, %s104
      %p111 = scmp.eq.s32.totalorder %s19, 3
      %p112 = por %p110, %p111
      %p113 = scmp.ne.s32.totalorder %s104, %s105
      %p114 = scmp.eq.s32.totalorder %s19, 0
      %p115 = por %p113, %p114
      %p116 = scmp.ne.s32.totalorder %s104, %s105
      %p117 = scmp.eq.s32.totalorder %s20, 3
      %p118 = por %p116, %p117
      %p120 = scmp.ne.s32.totalorder %s105, %s119
      %p121 = scmp.eq.s32.totalorder %s20, 0
      %p122 = por %p120, %p121
      %s124 = sadd.s32 %s123, 1
      %p127 = scmp.eq.s32.totalorder %s14, 3
      %p128 = scmp.ne.s32.totalorder %s123, %s125
      %p129 = scmp.eq.s32.totalorder %s14, 0
      %p130 = por %p128, %p129
      %p131 = scmp.ne.s32.totalorder %s123, %s125
      %p132 = scmp.eq.s32.totalorder %s19, 3
      %p133 = por %p131, %p132
      %p134 = scmp.ne.s32.totalorder %s125, %s126
      %p135 = scmp.eq.s32.totalorder %s19, 0
      %p136 = por %p134, %p135
      %p137 = scmp.ne.s32.totalorder %s125, %s126
      %p138 = scmp.eq.s32.totalorder %s20, 3
      %p139 = por %p137, %p138
      %p141 = scmp.ne.s32.totalorder %s126, %s140
      %p142 = scmp.eq.s32.totalorder %s20, 0
      %p143 = por %p141, %p142
      %s144 = ssub.s32 %s21, %s33
      %p145 = scmp.eq.s32.totalorder %s144, 0
      %s147 = sadd.s32 %s146, 1
      %s148 = scalar_select %p145, %s146, %s147
      %p151 = pneg %p145
      %p152 = scmp.eq.s32.totalorder %s14, 3
      %p153 = por %p151, %p152
      %p154 = scmp.ne.s32.totalorder %s146, %s149
      %p155 = scmp.eq.s32.totalorder %s14, 0
      %p156 = por %p154, %p155
      %p157 = scmp.ne.s32.totalorder %s146, %s149
      %p158 = scmp.eq.s32.totalorder %s19, 3
      %p159 = por %p157, %p158
      %p160 = scmp.ne.s32.totalorder %s149, %s150
      %p161 = scmp.eq.s32.totalorder %s19, 0
      %p162 = por %p160, %p161
      %p163 = scmp.ne.s32.totalorder %s149, %s150
      %p164 = scmp.eq.s32.totalorder %s20, 3
      %p165 = por %p163, %p164
      %p167 = scmp.ne.s32.totalorder %s150, %s166
      %p168 = scmp.eq.s32.totalorder %s20, 0
      %p169 = por %p167, %p168
      %p170 = scmp.le.s32.totalorder 1, %s14
      %p171 = scmp.lt.s32.totalorder %s14, 5
      %p172 = pnand %p170, %p171
      %p173 = pneg %p172
      // Predicated region
      $region9: #{tpu_custom_call.1} parent=5 // pred_check
        _
      $region10: #{tpu_custom_call.1} parent=5 // pred_check_branch
        %175 = sbr.rel (%p172) target = $region12
      $region11: #{tpu_custom_call.1} parent=5 // pred_region
        %s176 = ssub.s32 %s14, 1
        // Predicated region
        $region13: #{tpu_custom_call.1} parent=11 // pred_check
          %p177 = pneg %p73
        $region14: #{tpu_custom_call.1} parent=11 // pred_check_branch
          %179 = sbr.rel (%p177) target = $region16
        $region15: #{tpu_custom_call.1} parent=11 // pred_region
          _
        $region16: #{tpu_custom_call.1} parent=11 // pred_fallthru
          _
        // Predicated region
        $region17: #{tpu_custom_call.1} parent=11 // pred_check
          %p180 = pneg %p94
        $region18: #{tpu_custom_call.1} parent=11 // pred_check_branch
          %182 = sbr.rel (%p180) target = $region20
        $region19: #{tpu_custom_call.1} parent=11 // pred_region
          _
        $region20: #{tpu_custom_call.1} parent=11 // pred_fallthru
          _
        // Predicated region
        $region21: #{tpu_custom_call.1} parent=11 // pred_check
          %p183 = pneg %p115
        $region22: #{tpu_custom_call.1} parent=11 // pred_check_branch
          %185 = sbr.rel (%p183) target = $region24
        $region23: #{tpu_custom_call.1} parent=11 // pred_region
          _
        $region24: #{tpu_custom_call.1} parent=11 // pred_fallthru
          _
        // Predicated region
        $region25: #{tpu_custom_call.1} parent=11 // pred_check
          %p186 = pneg %p136
        $region26: #{tpu_custom_call.1} parent=11 // pred_check_branch
          %188 = sbr.rel (%p186) target = $region28
        $region27: #{tpu_custom_call.1} parent=11 // pred_region
          _
        $region28: #{tpu_custom_call.1} parent=11 // pred_fallthru
          _
      $region12: #{tpu_custom_call.1} parent=5 // pred_fallthru
        _
      %p189 = scmp.lt.s32.totalorder %s14, 4
      // Predicated region
      $region29: #{tpu_custom_call.1} parent=5 // pred_check
        %p190 = pneg %p189
      $region30: #{tpu_custom_call.1} parent=5 // pred_check_branch
        %192 = sbr.rel (%p190) target = $region32
      $region31: #{tpu_custom_call.1} parent=5 // pred_region
        // Predicated region
        $region33: #{tpu_custom_call.1} parent=31 // pred_check
          %p193 = pneg %p46
        $region34: #{tpu_custom_call.1} parent=31 // pred_check_branch
          %195 = sbr.rel (%p193) target = $region36
        $region35: #{tpu_custom_call.1} parent=31 // pred_region
          %p196 = scmp.lt.s32.totalorder %s21, 1
          %s197 = scalar_select %p196, %s21, 1
          %s198 = smul.addr %s197, 8
          %s199 = scalar_lea.vmem %s0, %s198
        $region36: #{tpu_custom_call.1} parent=31 // pred_fallthru
          _
      $region32: #{tpu_custom_call.1} parent=5 // pred_fallthru
        _
      %p200 = scmp.le.s32.totalorder 1, %s14
      %p201 = scmp.lt.s32.totalorder %s14, 5
      %p202 = pnand %p200, %p201
      %p203 = pneg %p202
      // Predicated region
      $region37: #{tpu_custom_call.1} parent=5 // pred_check
        _
      $region38: #{tpu_custom_call.1} parent=5 // pred_check_branch
        %205 = sbr.rel (%p202) target = $region40
      $region39: #{tpu_custom_call.1} parent=5 // pred_region
        %s206 = ssub.s32 %s14, 1
        %p207 = scmp.lt.s32.totalorder %s23, 1
        %s208 = scalar_select %p207, %s23, 1
        %s209 = smul.addr %s208, 8
        %s210 = scalar_lea.vmem %s0, %s209
        %p211 = pneg %p52
        %p212 = pneg %p49
        %p213 = pneg %p73
        %p214 = pneg %p70
        %p215 = pneg %p94
        %p216 = pneg %p91
        %p217 = pneg %p115
        %p218 = pneg %p112
        %p219 = pneg %p136
        %p220 = pneg %p133
        %p221 = pneg %p162
        %p222 = pneg %p159
        %s223 = sand.u32 %s149, 1
        %s224 = scalar_lea.sflag [#allocation5], %s223
        %s225 = sand.u32 %s149, 1
        %s226 = smul.addr %s225, 8
        %s227 = scalar_lea.vmem [#allocation4], %s226
        %p228 = scmp.lt.s32.totalorder %s23, 1
        %s229 = scalar_select %p228, %s23, 1
        %s230 = smul.addr %s229, 8
        %s231 = scalar_lea.vmem %s0, %s230
        %p232 = scmp.eq.s32.totalorder %s24, 0
        // Predicated region
        $region41: #{tpu_custom_call.1} parent=39 // pred_check
          %p233 = pneg %p232
        $region42: #{tpu_custom_call.1} parent=39 // pred_check_branch
          %235 = sbr.rel (%p233) target = $region44
        $region43: #{tpu_custom_call.1} parent=39 // pred_region
          %v236 = vld [vmem:[%s231] sm:$0xff]
          %vm237 = vcmask 261120
          %238 = vst.msk [vmem:[#allocation2] sm:$0xff] %vm237, %v236
        $region44: #{tpu_custom_call.1} parent=39 // pred_fallthru
          _
        %v239 = vld [vmem:[#allocation2] sm:$0xff]
        %s240 = smul.u32 %s24, 32
        %s241 = scalar_lea.vmem %s1, %s240
        %v242 = vld [vmem:[%s241] sm:$0xff]
        %v243 = vld [vmem:[%s241 + $0x8] sm:$0xff]
        %v244 = vld [vmem:[%s241 + $0x10] sm:$0xff]
        %v245 = vld [vmem:[%s241 + $0x18] sm:$0xff]
        %vm246 = vcmask 261120
        %v248 = vsel %vm246, %v239, 0
        %250 = vmatprep.subr.mxu0 0.0
        %251 = vmatpush1.msra.mxu0 %v242
        %252 = vmatprep.subr.mxu0 0.0
        %253 = vmatpush1.msra.mxu0 %v243
        %254 = vmatprep.subr.mxu0 0.0
        %255 = vmatpush1.msra.mxu0 %v244
        %256 = vmatprep.subr.mxu0 0.0
        %257 = vmatpush1.msra.mxu0 %v245
        %258 = vmatprep.subr.mxu0 0.0
        %259 = vmatpush1.msra.mxu0 0.0
        %260 = vmatprep.subr.mxu0 0.0
        %261 = vmatpush1.msra.mxu0 0.0
        %262 = vmatprep.subr.mxu0 0.0
        %263 = vmatpush1.msra.mxu0 0.0
        %264 = vmatprep.subr.mxu0 0.0
        %265 = vmatpush1.msra.mxu0 0.0
        %266 = vmatprep.subr.mxu0 0.0
        %267 = vmatpush1.msra.mxu0 0.0
        %268 = vmatprep.subr.mxu0 0.0
        %269 = vmatpush1.msra.mxu0 0.0
        %270 = vmatprep.subr.mxu0 0.0
        %271 = vmatpush1.msra.mxu0 0.0
        %272 = vmatprep.subr.mxu0 0.0
        %273 = vmatpush1.msra.mxu0 0.0
        %274 = vmatprep.subr.mxu0 0.0
        %275 = vmatpush1.msra.mxu0 0.0
        %276 = vmatprep.subr.mxu0 0.0
        %277 = vmatpush1.msra.mxu0 0.0
        %278 = vmatprep.subr.mxu0 0.0
        %279 = vmatpush1.msra.mxu0 0.0
        %280 = vmatprep.subr.mxu0 0.0
        %281 = vmatpush1.msra.mxu0 0.0
        %282 = vmatprep.subr.mxu0 0.0
        %283 = vmatpush1.msra.mxu0 0.0
        %284 = vmatprep.subr.mxu0 0.0
        %285 = vmatpush1.msra.mxu0 0.0
        %286 = vmatprep.subr.mxu0 0.0
        %287 = vmatpush1.msra.mxu0 0.0
        %288 = vmatprep.subr.mxu0 0.0
        %289 = vmatpush1.msra.mxu0 0.0
        %290 = vmatprep.subr.mxu0 0.0
        %291 = vmatpush1.msra.mxu0 0.0
        %292 = vmatprep.subr.mxu0 0.0
        %293 = vmatpush1.msra.mxu0 0.0
        %294 = vmatprep.subr.mxu0 0.0
        %295 = vmatpush1.msra.mxu0 0.0
        %296 = vmatprep.subr.mxu0 0.0
        %297 = vmatpush1.msra.mxu0 0.0
        %298 = vmatprep.subr.mxu0 0.0
        %299 = vmatpush1.msra.mxu0 0.0
        %300 = vmatprep.subr.mxu0 0.0
        %301 = vmatpush1.msra.mxu0 0.0
        %302 = vmatprep.subr.mxu0 0.0
        %303 = vmatpush1.msra.mxu0 0.0
        %304 = vmatprep.subr.mxu0 0.0
        %305 = vmatpush1.msra.mxu0 0.0
        %306 = vmatprep.subr.mxu0 0.0
        %307 = vmatpush1.msra.mxu0 0.0
        %308 = vmatprep.subr.mxu0 0.0
        %309 = vmatpush1.msra.mxu0 0.0
        %310 = vmatprep.subr.mxu0 0.0
        %311 = vmatpush1.msra.mxu0 0.0
        %312 = vmatprep.subr.mxu0 0.0
        %313 = vmatpush1.msra.mxu0 0.0
        %314 = vmatprep.mubr.f32.mxu0 0.0
        %315 = vmatmul.mubr.f32.gmra.mrb[0].mxu0 %v248
        %v316 = vpop.f32.mrb[0].mxu0
        %v317 = vadd.f32 0.0, %v316
        %v318 = vpop.f32.mrb[0].mxu0
        %319 = vdwg.mxu0
        %321 = vrot.lane.b32.xlu0 %v317, 120
        %v322 = vpop.permute.xlu0 %321
        %vm323 = vcmask 64512
        %v324 = vsel %vm323, %v317, 0
        %v326 = vsel %vm323, %v322, 0
        %328 = vmatprep.subr.mxu0 0.0
        %329 = vmatpush1.xpose.msra.mxu0 %v326
        %330 = vmatprep.subr.mxu0 0.0
        %331 = vmatpush1.xpose.msra.mxu0 0.0
        %332 = vmatprep.subr.mxu0 0.0
        %333 = vmatpush1.xpose.msra.mxu0 0.0
        %334 = vmatprep.subr.mxu0 0.0
        %335 = vmatpush1.xpose.msra.mxu0 0.0
        %336 = vmatprep.subr.mxu0 0.0
        %337 = vmatpush1.xpose.msra.mxu0 0.0
        %338 = vmatprep.subr.mxu0 0.0
        %339 = vmatpush1.xpose.msra.mxu0 0.0
        %340 = vmatprep.subr.mxu0 0.0
        %341 = vmatpush1.xpose.msra.mxu0 0.0
        %342 = vmatprep.subr.mxu0 0.0
        %343 = vmatpush1.xpose.msra.mxu0 0.0
        %344 = vmatprep.subr.mxu0 0.0
        %345 = vmatpush1.xpose.msra.mxu0 0.0
        %346 = vmatprep.subr.mxu0 0.0
        %347 = vmatpush1.xpose.msra.mxu0 0.0
        %348 = vmatprep.subr.mxu0 0.0
        %349 = vmatpush1.xpose.msra.mxu0 0.0
        %350 = vmatprep.subr.mxu0 0.0
        %351 = vmatpush1.xpose.msra.mxu0 0.0
        %352 = vmatprep.subr.mxu0 0.0
        %353 = vmatpush1.xpose.msra.mxu0 0.0
        %354 = vmatprep.subr.mxu0 0.0
        %355 = vmatpush1.xpose.msra.mxu0 0.0
        %356 = vmatprep.subr.mxu0 0.0
        %357 = vmatpush1.xpose.msra.mxu0 0.0
        %358 = vmatprep.subr.mxu0 0.0
        %359 = vmatpush1.xpose.msra.mxu0 0.0
        %360 = vmatprep.subr.mxu0 0.0
        %361 = vmatpush1.xpose.msra.mxu0 0.0
        %362 = vmatprep.subr.mxu0 0.0
        %363 = vmatpush1.xpose.msra.mxu0 0.0
        %364 = vmatprep.subr.mxu0 0.0
        %365 = vmatpush1.xpose.msra.mxu0 0.0
        %366 = vmatprep.subr.mxu0 0.0
        %367 = vmatpush1.xpose.msra.mxu0 0.0
        %368 = vmatprep.subr.mxu0 0.0
        %369 = vmatpush1.xpose.msra.mxu0 0.0
        %370 = vmatprep.subr.mxu0 0.0
        %371 = vmatpush1.xpose.msra.mxu0 0.0
        %372 = vmatprep.subr.mxu0 0.0
        %373 = vmatpush1.xpose.msra.mxu0 0.0
        %374 = vmatprep.subr.mxu0 0.0
        %375 = vmatpush1.xpose.msra.mxu0 0.0
        %376 = vmatprep.subr.mxu0 0.0
        %377 = vmatpush1.xpose.msra.mxu0 0.0
        %378 = vmatprep.subr.mxu0 0.0
        %379 = vmatpush1.xpose.msra.mxu0 0.0
        %380 = vmatprep.subr.mxu0 0.0
        %381 = vmatpush1.xpose.msra.mxu0 0.0
        %382 = vmatprep.subr.mxu0 0.0
        %383 = vmatpush1.xpose.msra.mxu0 0.0
        %384 = vmatprep.subr.mxu0 0.0
        %385 = vmatpush1.xpose.msra.mxu0 0.0
        %386 = vmatprep.subr.mxu0 0.0
        %387 = vmatpush1.xpose.msra.mxu0 0.0
        %388 = vmatprep.subr.mxu0 0.0
        %389 = vmatpush1.xpose.msra.mxu0 0.0
        %390 = vmatprep.subr.mxu0 0.0
        %391 = vmatpush1.xpose.msra.mxu0 0.0
        %392 = vmatprep.mubr.f32.mxu0 0.0
        %393 = vmatmul.mubr.f32.gmra.mrb[0].mxu0 %v324
        %v394 = vpop.f32.mrb[0].mxu0
        %v395 = vadd.f32 0.0, %v394
        %v396 = vpop.f32.mrb[0].mxu0
        %397 = vdwg.mxu0
        %v398 = vsel %vm323, %v395, -inf
        %399 = vmax.xlane.f32.xlu0 %v398
        %v400 = vpop.xlane.xlu0 %399
        %v401 = vsub.f32 %v395, %v400
        %v402 = vmul.f32 %v401, 1.442695
        %v403 = vpow.pop %v402
        %v404 = vsel %vm323, %v403, 0.0
        %405 = vadd.xlane.f32.xlu0 %v404
        %v406 = vpop.xlane.xlu0 %405
        %v407 = vrcp.pop %v406
        %v408 = vmul.f32 %v403, %v407
        %409 = vrot.lane.b32.xlu0 %v317, 112
        %v410 = vpop.permute.xlu0 %409
        %v413 = vsel %vm323, %v408, 0
        %415 = vmatprep.subr.mxu0 0.0
        %416 = vmatpush1.msra.mxu0 %v410
        %417 = vmatprep.subr.mxu0 0.0
        %418 = vmatpush1.msra.mxu0 0.0
        %419 = vmatprep.subr.mxu0 0.0
        %420 = vmatpush1.msra.mxu0 0.0
        %421 = vmatprep.subr.mxu0 0.0
        %422 = vmatpush1.msra.mxu0 0.0
        %423 = vmatprep.subr.mxu0 0.0
        %424 = vmatpush1.msra.mxu0 0.0
        %425 = vmatprep.subr.mxu0 0.0
        %426 = vmatpush1.msra.mxu0 0.0
        %427 = vmatprep.subr.mxu0 0.0
        %428 = vmatpush1.msra.mxu0 0.0
        %429 = vmatprep.subr.mxu0 0.0
        %430 = vmatpush1.msra.mxu0 0.0
        %431 = vmatprep.subr.mxu0 0.0
        %432 = vmatpush1.msra.mxu0 0.0
        %433 = vmatprep.subr.mxu0 0.0
        %434 = vmatpush1.msra.mxu0 0.0
        %435 = vmatprep.subr.mxu0 0.0
        %436 = vmatpush1.msra.mxu0 0.0
        %437 = vmatprep.subr.mxu0 0.0
        %438 = vmatpush1.msra.mxu0 0.0
        %439 = vmatprep.subr.mxu0 0.0
        %440 = vmatpush1.msra.mxu0 0.0
        %441 = vmatprep.subr.mxu0 0.0
        %442 = vmatpush1.msra.mxu0 0.0
        %443 = vmatprep.subr.mxu0 0.0
        %444 = vmatpush1.msra.mxu0 0.0
        %445 = vmatprep.subr.mxu0 0.0
        %446 = vmatpush1.msra.mxu0 0.0
        %447 = vmatprep.subr.mxu0 0.0
        %448 = vmatpush1.msra.mxu0 0.0
        %449 = vmatprep.subr.mxu0 0.0
        %450 = vmatpush1.msra.mxu0 0.0
        %451 = vmatprep.subr.mxu0 0.0
        %452 = vmatpush1.msra.mxu0 0.0
        %453 = vmatprep.subr.mxu0 0.0
        %454 = vmatpush1.msra.mxu0 0.0
        %455 = vmatprep.subr.mxu0 0.0
        %456 = vmatpush1.msra.mxu0 0.0
        %457 = vmatprep.subr.mxu0 0.0
        %458 = vmatpush1.msra.mxu0 0.0
        %459 = vmatprep.subr.mxu0 0.0
        %460 = vmatpush1.msra.mxu0 0.0
        %461 = vmatprep.subr.mxu0 0.0
        %462 = vmatpush1.msra.mxu0 0.0
        %463 = vmatprep.subr.mxu0 0.0
        %464 = vmatpush1.msra.mxu0 0.0
        %465 = vmatprep.subr.mxu0 0.0
        %466 = vmatpush1.msra.mxu0 0.0
        %467 = vmatprep.subr.mxu0 0.0
        %468 = vmatpush1.msra.mxu0 0.0
        %469 = vmatprep.subr.mxu0 0.0
        %470 = vmatpush1.msra.mxu0 0.0
        %471 = vmatprep.subr.mxu0 0.0
        %472 = vmatpush1.msra.mxu0 0.0
        %473 = vmatprep.subr.mxu0 0.0
        %474 = vmatpush1.msra.mxu0 0.0
        %475 = vmatprep.subr.mxu0 0.0
        %476 = vmatpush1.msra.mxu0 0.0
        %477 = vmatprep.subr.mxu0 0.0
        %478 = vmatpush1.msra.mxu0 0.0
        %479 = vmatprep.mubr.f32.mxu0 0.0
        %480 = vmatmul.mubr.f32.gmra.mrb[0].mxu0 %v413
        %v481 = vpop.f32.mrb[0].mxu0
        %v482 = vadd.f32 0.0, %v481
        %v483 = vpop.f32.mrb[0].mxu0
        %484 = vdwg.mxu0
        // Predicated region
        $region45: #{tpu_custom_call.1} parent=39 // pred_check
          %p485 = pneg %p232
        $region46: #{tpu_custom_call.1} parent=39 // pred_check_branch
          %487 = sbr.rel (%p485) target = $region48
        $region47: #{tpu_custom_call.1} parent=39 // pred_region
          %488 = vst.msk [vmem:[#allocation3] sm:$0xff] %vm323, %v482
        $region48: #{tpu_custom_call.1} parent=39 // pred_fallthru
          _
        %p489 = scmp.eq.s32.totalorder %s24, 1
        // Predicated region
        $region49: #{tpu_custom_call.1} parent=39 // pred_check
          %p490 = pneg %p489
        $region50: #{tpu_custom_call.1} parent=39 // pred_check_branch
          %492 = sbr.rel (%p490) target = $region52
        $region51: #{tpu_custom_call.1} parent=39 // pred_region
          %494 = vrot.lane.b32.xlu0 %v482, 8
          %v495 = vpop.permute.xlu0 %494
          %vm497 = vcmask 130112
          %498 = vst.msk [vmem:[#allocation3] sm:$0xff] %vm497, %v495
          %v499 = vld [vmem:[#allocation3] sm:$0xff]
          %v500 = vld [vmem:[%s2] sm:$0xff]
          %v501 = vld [vmem:[%s2 + $0x8] sm:$0xff]
          %vm502 = vcmask 130048
          %v504 = vsel %vm502, %v499, 0
          %506 = vmatprep.subr.mxu0 0.0
          %507 = vmatpush1.msra.mxu0 %v500
          %508 = vmatprep.subr.mxu0 0.0
          %509 = vmatpush1.msra.mxu0 %v501
          %510 = vmatprep.subr.mxu0 0.0
          %511 = vmatpush1.msra.mxu0 0.0
          %512 = vmatprep.subr.mxu0 0.0
          %513 = vmatpush1.msra.mxu0 0.0
          %514 = vmatprep.subr.mxu0 0.0
          %515 = vmatpush1.msra.mxu0 0.0
          %516 = vmatprep.subr.mxu0 0.0
          %517 = vmatpush1.msra.mxu0 0.0
          %518 = vmatprep.subr.mxu0 0.0
          %519 = vmatpush1.msra.mxu0 0.0
          %520 = vmatprep.subr.mxu0 0.0
          %521 = vmatpush1.msra.mxu0 0.0
          %522 = vmatprep.subr.mxu0 0.0
          %523 = vmatpush1.msra.mxu0 0.0
          %524 = vmatprep.subr.mxu0 0.0
          %525 = vmatpush1.msra.mxu0 0.0
          %526 = vmatprep.subr.mxu0 0.0
          %527 = vmatpush1.msra.mxu0 0.0
          %528 = vmatprep.subr.mxu0 0.0
          %529 = vmatpush1.msra.mxu0 0.0
          %530 = vmatprep.subr.mxu0 0.0
          %531 = vmatpush1.msra.mxu0 0.0
          %532 = vmatprep.subr.mxu0 0.0
          %533 = vmatpush1.msra.mxu0 0.0
          %534 = vmatprep.subr.mxu0 0.0
          %535 = vmatpush1.msra.mxu0 0.0
          %536 = vmatprep.subr.mxu0 0.0
          %537 = vmatpush1.msra.mxu0 0.0
          %538 = vmatprep.subr.mxu0 0.0
          %539 = vmatpush1.msra.mxu0 0.0
          %540 = vmatprep.subr.mxu0 0.0
          %541 = vmatpush1.msra.mxu0 0.0
          %542 = vmatprep.subr.mxu0 0.0
          %543 = vmatpush1.msra.mxu0 0.0
          %544 = vmatprep.subr.mxu0 0.0
          %545 = vmatpush1.msra.mxu0 0.0
          %546 = vmatprep.subr.mxu0 0.0
          %547 = vmatpush1.msra.mxu0 0.0
          %548 = vmatprep.subr.mxu0 0.0
          %549 = vmatpush1.msra.mxu0 0.0
          %550 = vmatprep.subr.mxu0 0.0
          %551 = vmatpush1.msra.mxu0 0.0
          %552 = vmatprep.subr.mxu0 0.0
          %553 = vmatpush1.msra.mxu0 0.0
          %554 = vmatprep.subr.mxu0 0.0
          %555 = vmatpush1.msra.mxu0 0.0
          %556 = vmatprep.subr.mxu0 0.0
          %557 = vmatpush1.msra.mxu0 0.0
          %558 = vmatprep.subr.mxu0 0.0
          %559 = vmatpush1.msra.mxu0 0.0
          %560 = vmatprep.subr.mxu0 0.0
          %561 = vmatpush1.msra.mxu0 0.0
          %562 = vmatprep.subr.mxu0 0.0
          %563 = vmatpush1.msra.mxu0 0.0
          %564 = vmatprep.subr.mxu0 0.0
          %565 = vmatpush1.msra.mxu0 0.0
          %566 = vmatprep.subr.mxu0 0.0
          %567 = vmatpush1.msra.mxu0 0.0
          %568 = vmatprep.subr.mxu0 0.0
          %569 = vmatpush1.msra.mxu0 0.0
          %570 = vmatprep.mubr.f32.mxu0 0.0
          %571 = vmatmul.mubr.f32.gmra.mrb[0].mxu0 %v504
          %v572 = vpop.f32.mrb[0].mxu0
          %v573 = vadd.f32 0.0, %v572
          %v574 = vpop.f32.mrb[0].mxu0
          %575 = vdwg.mxu0
          %v576 = vld [vmem:[%s231] sm:$0xff]
          %v577 = vadd.f32 %v576, %v573
          %v578 = vld [vmem:[%s3] sm:$0x1]
          %v579 = vld [vmem:[%s4] sm:$0x1]
          %v580 = vsel %vm246, %v577, 0.0
          %581 = vadd.xlane.f32.xlu0 %v580
          %v582 = vpop.xlane.xlu0 %581
          %v583 = vrcp.pop 32.0
          %v584 = vmul.f32 %v582, %v583
          %v585 = vsub.f32 %v577, %v584
          %v586 = vmul.f32 %v585, %v585
          %v587 = vsel %vm246, %v586, 0.0
          %588 = vadd.xlane.f32.xlu0 %v587
          %v589 = vpop.xlane.xlu0 %588
          %v590 = vmul.f32 %v589, %v583
          %v591 = vadd.f32 %v590, 1e-05
          %v592 = vrsqrt.pop %v591
          %v593 = vmul.f32 %v585, %v592
          %v595 = vlaneseq
          %v596 = vshrl.u32 %v595, 7
          %v597 = vsub.s32 0, %v596
          %v598 = vrot.slane %v578, %v597
          %v600 = vmul.f32 %v593, %v598
          %v602 = vlaneseq
          %v603 = vshrl.u32 %v602, 7
          %v604 = vsub.s32 0, %v603
          %v605 = vrot.slane %v579, %v604
          %v607 = vadd.f32 %v600, %v605
          %608 = vst.msk [vmem:[%s227] sm:$0xff] %vm246, %v607
        $region52: #{tpu_custom_call.1} parent=39 // pred_fallthru
          _
        %s609 = sand.u32 %s149, 1
        %s610 = scalar_lea.sflag [#allocation5], %s609
        %s611 = sand.u32 %s149, 1
        %s612 = smul.addr %s611, 8
        %s613 = scalar_lea.vmem [#allocation4], %s612
        // Predicated region
        $region53: #{tpu_custom_call.1} parent=39 // pred_check
          %p614 = pneg %p159
        $region54: #{tpu_custom_call.1} parent=39 // pred_check_branch
          %616 = sbr.rel (%p614) target = $region56
        $region55: #{tpu_custom_call.1} parent=39 // pred_region
          %s618 = ssub.s32 128, 128
          %619 = vsyncadd %s610, %s618
          %s620 = smul.addr %s23, 128
          %s621 = scalar_lea.hbm %s5, %s620
          %s623 = sshll.u32 %s613, 4
          %s624 = int_to_ptr.vmem [resolvable:$true] %s623
          %626 = dma.vmem_to_hbm [thread:$0]  %s624, 128, %s621, %s610
        $region56: #{tpu_custom_call.1} parent=39 // pred_fallthru
          _
      $region40: #{tpu_custom_call.1} parent=5 // pred_fallthru
        _
      %p627 = scmp.le.s32.totalorder 2, %s14
      // Predicated region
      $region57: #{tpu_custom_call.1} parent=5 // pred_check
        %p628 = pneg %p627
      $region58: #{tpu_custom_call.1} parent=5 // pred_check_branch
        %630 = sbr.rel (%p628) target = $region60
      $region59: #{tpu_custom_call.1} parent=5 // pred_region
        %s631 = ssub.s32 %s14, 2
        // Predicated region
        $region61: #{tpu_custom_call.1} parent=59 // pred_check
          %p632 = pneg %p165
        $region62: #{tpu_custom_call.1} parent=59 // pred_check_branch
          %634 = sbr.rel (%p632) target = $region64
        $region63: #{tpu_custom_call.1} parent=59 // pred_region
          %s635 = sand.u32 %s150, 1
          %s636 = scalar_lea.sflag [#allocation5], %s635
          %s637 = sand.u32 %s150, 1
          %s638 = smul.addr %s637, 8
          %s639 = scalar_lea.vmem [#allocation4], %s638
          %640 = dma.done %s636, 128
        $region64: #{tpu_custom_call.1} parent=59 // pred_fallthru
          _
      $region60: #{tpu_custom_call.1} parent=5 // pred_fallthru
        _
    $region6: #{tpu_custom_call.1} parent=1 // loop_footer
      %s18 = sadd.s32 1, %s14
    $region7: #{tpu_custom_call.1} parent=1 // loop_footer_branch
      %13 = sbr.rel target = $region3
    $region8: #{tpu_custom_call.1} parent=1 // loop_exit
      _
    %641 = vsyncpa [#allocation5], 1
    %s642 = scalar_lea.sflag [#allocation5], 1
    %643 = vsyncpa %s642, 1

</llo_original>
